<compile_context>
chip_gen: v6e
topology: v6e:2x2x1
jax: 0.10.0
libtpu: 0.0.40
codegen_flags: <defaults>
</compile_context>

<pallas_src>
import functools

import jax
import jax.numpy as jnp
import numpy as np
from jax.experimental import pallas as pl
from jax.experimental.pallas import tpu as pltpu

A_PAD = 128          # lane-dense output width (unmasked vst)
BLOCK_N_MAX = 256    # max batch-tile rows per grid step


def _round_up(x, m):
    return ((x + m - 1) // m) * m


def weight_offsets(c, H, l2):
    """Row offsets of each weight segment inside the packed (R, 128) buffer.

    Segments are 16-row aligned (bf16 sublane pack) so every in-kernel slice
    of a whole segment starts on a tile boundary.
    """
    off_w1 = 0                                   # conv1: 2*c rows
    off_w2 = _round_up(off_w1 + 2 * c, 16)       # conv2: 3*H rows
    off_fc1 = _round_up(off_w2 + 3 * H, 16)      # fc1:   l2*H rows
    off_fc2 = _round_up(off_fc1 + l2 * H, 16)    # fc2:   H rows
    total = _round_up(off_fc2 + H, 16)
    return off_w1, off_w2, off_fc1, off_fc2, total


def pack_params(conv1_w, conv1_b, conv2_w, conv2_b,
                fc1_w, fc1_b, fc2_w, fc2_b):
    """One-time weight repack into (W_bf16, B_f32). Do OUTSIDE the hot path."""
    H, c, k1 = conv1_w.shape
    assert k1 == 2
    A = fc2_w.shape[0]
    assert A <= A_PAD
    l2 = fc1_w.shape[1] // H
    off_w1, off_w2, off_fc1, off_fc2, total = weight_offsets(c, H, l2)

    # conv1: K-split tap weights; rows tap*c + cin = conv1_w[:, cin, tap].
    w1 = jnp.transpose(conv1_w, (2, 1, 0)).reshape(2 * c, H)
    # conv2: rows tap*H + h_in = conv2_w[:, h_in, tap].
    w2 = jnp.transpose(conv2_w, (2, 1, 0)).reshape(3 * H, H)
    # fc1: PyTorch channel-major flatten index = h_in*l2 + l -> rows l*H + h_in.
    wfc1 = jnp.transpose(fc1_w.reshape(H, H, l2), (2, 1, 0)).reshape(l2 * H, H)

    W = jnp.zeros((total, A_PAD), jnp.bfloat16)
    W = W.at[off_w1:off_w1 + 2 * c, 0:H].set(w1.astype(jnp.bfloat16))
    W = W.at[off_w2:off_w2 + 3 * H, 0:H].set(w2.astype(jnp.bfloat16))
    W = W.at[off_fc1:off_fc1 + l2 * H, 0:H].set(wfc1.astype(jnp.bfloat16))
    W = W.at[off_fc2:off_fc2 + H, 0:A].set(fc2_w.T.astype(jnp.bfloat16))

    B = jnp.zeros((8, A_PAD), jnp.float32)
    B = B.at[0, 0:H].set(conv1_b.astype(jnp.float32))
    B = B.at[1, 0:H].set(conv2_b.astype(jnp.float32))
    B = B.at[2, 0:H].set(fc1_b.astype(jnp.float32))
    B = B.at[3, 0:A].set(fc2_b.astype(jnp.float32))
    return W, B


def conv_agent_kernel(x_ref, w_ref, b_ref, o_ref, *, t, c, hidden, block_n):
    """One batch tile of the whole network.

    x_ref: (t*block_n, c)   bf16  (time-major slab; time shift = block_n rows)
    w_ref: (R, 128)         bf16  packed weights (conv1|conv2|fc1|fc2 segments)
    b_ref: (8, 128)         f32   packed biases (rows 0..3)
    o_ref: (block_n, 128)   bf16  lane-dense padded output
    """
    H = hidden
    l1, l2 = t - 1, t - 3
    r1, r2 = l1 * block_n, l2 * block_n
    off_w1, off_w2, off_fc1, off_fc2, _ = weight_offsets(c, H, l2)

    x = x_ref[...]                                       # (t*block_n, c) bf16

    # ---- conv1 (k=2): K-split accumulating matmuls over the 2 taps --------
    y1 = (jnp.dot(x[0:r1, :], w_ref[off_w1:off_w1 + c, 0:H],
                  preferred_element_type=jnp.float32)
          + jnp.dot(x[block_n:block_n + r1, :],
                    w_ref[off_w1 + c:off_w1 + 2 * c, 0:H],
                    preferred_element_type=jnp.float32))
    y1 = jnp.maximum(y1 + b_ref[0:1, 0:H], 0.0)          # (l1*block_n, H) f32

    # ---- conv2 (k=3): K-split over the 3 taps ------------------------------
    y2 = None
    for tap in range(3):
        a_tap = y1[tap * block_n:tap * block_n + r2, :].astype(jnp.bfloat16)
        w_tap = w_ref[off_w2 + tap * H:off_w2 + (tap + 1) * H, 0:H]
        term = jnp.dot(a_tap, w_tap, preferred_element_type=jnp.float32)
        y2 = term if y2 is None else y2 + term
    y2 = jnp.maximum(y2 + b_ref[1:2, 0:H], 0.0)          # (l2*block_n, H) f32

    # ---- fc1: K-split over the l2 time slabs -------------------------------
    z = None
    for l in range(l2):
        a_l = y2[l * block_n:(l + 1) * block_n, :].astype(jnp.bfloat16)
        w_l = w_ref[off_fc1 + l * H:off_fc1 + (l + 1) * H, 0:H]
        term = jnp.dot(a_l, w_l, preferred_element_type=jnp.float32)
        z = term if z is None else z + term
    z = jnp.maximum(z + b_ref[2:3, 0:H], 0.0)            # (block_n, H) f32

    # ---- fc2: lane-dense 128-wide output (bf16 writeback, f32 accum) -------
    q = jnp.dot(z.astype(jnp.bfloat16), w_ref[off_fc2:off_fc2 + H, :],
                preferred_element_type=jnp.float32) + b_ref[3:4, :]
    o_ref[...] = q.astype(o_ref.dtype)


@functools.partial(jax.jit, static_argnames=("hidden_dim", "n_actions"))
def conv_agent_forward(inputs, packed, *, hidden_dim, n_actions):
    """Per-call path: minimal layout glue + one gridded pallas_call."""
    W, B = packed
    b, t, a, c = inputs.shape
    N = b * a
    assert n_actions <= A_PAD

    block_n = min(BLOCK_N_MAX, _round_up(max(N, 1), 16))
    n_tiles = -(-N // block_n)
    n_pad = n_tiles * block_n

    # (b, t, a, c) -> time-major (t, N, c); pad batch to n_pad; tile batch.
    x = jnp.transpose(inputs, (1, 0, 2, 3)).reshape(t, N, c)
    if n_pad != N:
        x = jnp.pad(x, ((0, 0), (0, n_pad - N), (0, 0)))
    x = jnp.transpose(x.reshape(t, n_tiles, block_n, c), (1, 0, 2, 3))
    x = x.reshape(n_tiles, t * block_n, c).astype(jnp.bfloat16)

    kernel = functools.partial(conv_agent_kernel, t=t, c=c,
                               hidden=hidden_dim, block_n=block_n)
    out = pl.pallas_call(
        kernel,
        out_shape=jax.ShapeDtypeStruct((n_pad, A_PAD), jnp.bfloat16),
        grid=(n_tiles,),
        in_specs=[
            # x: blocked over batch tiles (leading dim squeezed away).
            pl.BlockSpec((None, t * block_n, c), lambda i: (i, 0, 0)),
            # weights / biases: constant block -> stay resident across steps.
            pl.BlockSpec(W.shape, lambda i: (0, 0)),
            pl.BlockSpec(B.shape, lambda i: (0, 0)),
        ],
        out_specs=pl.BlockSpec((block_n, A_PAD), lambda i: (i, 0)),
        compiler_params=pltpu.CompilerParams(
            dimension_semantics=("parallel",)),
    )(x, W, B)

    q = out[:N, :n_actions].astype(jnp.float32).reshape(b, a, n_actions)
    return q, None  # matches PyTorch return (q.view(b, a, -1), None)


def ref_forward(inputs, conv1_w, conv1_b, conv2_w, conv2_b,
                fc1_w, fc1_b, fc2_w, fc2_b):
    """Pure-JAX f32 reference mirroring the PyTorch forward exactly."""
    b, t, a, c = inputs.shape
    x = jnp.transpose(inputs, (0, 2, 3, 1)).reshape(b * a, c, t)
    y = jax.lax.conv_general_dilated(x, conv1_w, (1,), 'VALID',
                                     dimension_numbers=('NCH', 'OIH', 'NCH'))
    y = jax.nn.relu(y + conv1_b[None, :, None])
    y = jax.lax.conv_general_dilated(y, conv2_w, (1,), 'VALID',
                                     dimension_numbers=('NCH', 'OIH', 'NCH'))
    y = jax.nn.relu(y + conv2_b[None, :, None])
    flat = y.reshape(b, a, -1)                     # channel-major flatten
    z = jax.nn.relu(flat @ fc1_w.T + fc1_b)
    q = z @ fc2_w.T + fc2_b
    return q


if __name__ == "__main__":
    # Small shapes implied by the module: inputs (b, t=frames, a, c)
    b, frames, a, c = 2, 8, 3, 4
    H, A = 32, 5                      # rnn_hidden_dim, n_actions
    L2 = frames - 3

    key = jax.random.PRNGKey(0)
    ks = jax.random.split(key, 9)
    inputs = jax.random.normal(ks[0], (b, frames, a, c), jnp.float32)
    conv1_w = 0.1 * jax.random.normal(ks[1], (H, c, 2), jnp.float32)
    conv1_b = 0.1 * jax.random.normal(ks[2], (H,), jnp.float32)
    conv2_w = 0.1 * jax.random.normal(ks[3], (H, H, 3), jnp.float32)
    conv2_b = 0.1 * jax.random.normal(ks[4], (H,), jnp.float32)
    fc1_w = 0.1 * jax.random.normal(ks[5], (H, L2 * H), jnp.float32)
    fc1_b = 0.1 * jax.random.normal(ks[6], (H,), jnp.float32)
    fc2_w = 0.1 * jax.random.normal(ks[7], (A, H), jnp.float32)
    fc2_b = 0.1 * jax.random.normal(ks[8], (A,), jnp.float32)

    # One-time weight repack, outside the per-call path.
    packed = tuple(jax.block_until_ready(p) for p in
                   pack_params(conv1_w, conv1_b, conv2_w, conv2_b,
                               fc1_w, fc1_b, fc2_w, fc2_b))

    q, hidden = conv_agent_forward(inputs, packed, hidden_dim=H, n_actions=A)
    jax.block_until_ready(q)

    q_ref = ref_forward(inputs, conv1_w, conv1_b, conv2_w, conv2_b,
                        fc1_w, fc1_b, fc2_w, fc2_b)
    assert q.shape == (b, a, A)
    assert hidden is None
    # bf16 matmul path (f32 accumulation) -> relaxed tolerance vs f32 reference.
    np.testing.assert_allclose(np.asarray(q), np.asarray(q_ref),
                               rtol=2e-2, atol=2e-2)
    print("KERNEL_OK")
</pallas_src>

<mosaic_0001>
module attributes {stable_mosaic.version = 11 : i64} {
  func.func @conv_agent_kernel(%arg0: i32, %arg1: memref<1x128x4xbf16, #tpu.memory_space<vmem>>, %arg2: memref<304x128xbf16, #tpu.memory_space<vmem>>, %arg3: memref<8x128xf32, #tpu.memory_space<vmem>>, %arg4: memref<16x128xbf16, #tpu.memory_space<vmem>>) attributes {dimension_semantics = [#tpu.dimension_semantics<parallel>], iteration_bounds = array<i64: 1>, scalar_prefetch = 0 : i64, scratch_operands = 0 : i64, tpu.core_type = #tpu.core_type<tc>, window_params = [{transform_indices = @transform_0, window_bounds = array<i64: 1, 128, 4>}, {pipeline_mode = #tpu.pipeline_mode<synchronous>, transform_indices = @transform_1, window_bounds = array<i64: 304, 128>}, {pipeline_mode = #tpu.pipeline_mode<synchronous>, transform_indices = @transform_2, window_bounds = array<i64: 8, 128>}, {transform_indices = @transform_3, window_bounds = array<i64: 16, 128>}]} {
    %c0 = arith.constant 0 : index
    %c0_0 = arith.constant 0 : index
    %c0_1 = arith.constant 0 : index
    %0 = vector.load %arg1[%c0, %c0_0, %c0_1] : memref<1x128x4xbf16, #tpu.memory_space<vmem>>, vector<1x128x4xbf16>
    %1 = vector.shape_cast %0 : vector<1x128x4xbf16> to vector<128x4xbf16>
    %2 = vector.extract_strided_slice %1 {offsets = [0, 0], sizes = [112, 4], strides = [1, 1]} : vector<128x4xbf16> to vector<112x4xbf16>
    %c0_2 = arith.constant 0 : index
    %c0_3 = arith.constant 0 : index
    %3 = vector.load %arg2[%c0_2, %c0_3] : memref<304x128xbf16, #tpu.memory_space<vmem>>, vector<4x32xbf16>
    %cst = arith.constant dense<0.000000e+00> : vector<112x32xf32>
    %4 = tpu.matmul %2, %3, %cst {dimension_numbers = #tpu.dot_dimension_numbers<[1], [0], [0], [1], [0, 0, 1, 1], [], []>} : vector<112x4xbf16>, vector<4x32xbf16>, vector<112x32xf32> -> vector<112x32xf32>
    %5 = vector.extract_strided_slice %1 {offsets = [16, 0], sizes = [112, 4], strides = [1, 1]} : vector<128x4xbf16> to vector<112x4xbf16>
    %c4 = arith.constant 4 : index
    %c0_4 = arith.constant 0 : index
    %6 = vector.load %arg2[%c4, %c0_4] : memref<304x128xbf16, #tpu.memory_space<vmem>>, vector<4x32xbf16>
    %cst_5 = arith.constant dense<0.000000e+00> : vector<112x32xf32>
    %7 = tpu.matmul %5, %6, %cst_5 {dimension_numbers = #tpu.dot_dimension_numbers<[1], [0], [0], [1], [0, 0, 1, 1], [], []>} : vector<112x4xbf16>, vector<4x32xbf16>, vector<112x32xf32> -> vector<112x32xf32>
    %8 = arith.addf %4, %7 : vector<112x32xf32>
    %c0_6 = arith.constant 0 : index
    %c0_7 = arith.constant 0 : index
    %9 = vector.load %arg3[%c0_6, %c0_7] : memref<8x128xf32, #tpu.memory_space<vmem>>, vector<1x32xf32>
    %10 = vector.broadcast %9 : vector<1x32xf32> to vector<112x32xf32>
    %11 = arith.addf %8, %10 : vector<112x32xf32>
    %cst_8 = arith.constant 0.000000e+00 : f32
    %12 = vector.broadcast %cst_8 : f32 to vector<112x32xf32>
    %13 = arith.maximumf %11, %12 : vector<112x32xf32>
    %14 = vector.extract_strided_slice %13 {offsets = [0, 0], sizes = [80, 32], strides = [1, 1]} : vector<112x32xf32> to vector<80x32xf32>
    %15 = arith.truncf %14 : vector<80x32xf32> to vector<80x32xbf16>
    %c16 = arith.constant 16 : index
    %c0_9 = arith.constant 0 : index
    %16 = vector.load %arg2[%c16, %c0_9] : memref<304x128xbf16, #tpu.memory_space<vmem>>, vector<32x32xbf16>
    %cst_10 = arith.constant dense<0.000000e+00> : vector<80x32xf32>
    %17 = tpu.matmul %15, %16, %cst_10 {dimension_numbers = #tpu.dot_dimension_numbers<[1], [0], [0], [1], [0, 0, 1, 1], [], []>} : vector<80x32xbf16>, vector<32x32xbf16>, vector<80x32xf32> -> vector<80x32xf32>
    %18 = vector.extract_strided_slice %13 {offsets = [16, 0], sizes = [80, 32], strides = [1, 1]} : vector<112x32xf32> to vector<80x32xf32>
    %19 = arith.truncf %18 : vector<80x32xf32> to vector<80x32xbf16>
    %c48 = arith.constant 48 : index
    %c0_11 = arith.constant 0 : index
    %20 = vector.load %arg2[%c48, %c0_11] : memref<304x128xbf16, #tpu.memory_space<vmem>>, vector<32x32xbf16>
    %cst_12 = arith.constant dense<0.000000e+00> : vector<80x32xf32>
    %21 = tpu.matmul %19, %20, %cst_12 {dimension_numbers = #tpu.dot_dimension_numbers<[1], [0], [0], [1], [0, 0, 1, 1], [], []>} : vector<80x32xbf16>, vector<32x32xbf16>, vector<80x32xf32> -> vector<80x32xf32>
    %22 = arith.addf %17, %21 : vector<80x32xf32>
    %23 = vector.extract_strided_slice %13 {offsets = [32, 0], sizes = [80, 32], strides = [1, 1]} : vector<112x32xf32> to vector<80x32xf32>
    %24 = arith.truncf %23 : vector<80x32xf32> to vector<80x32xbf16>
    %c80 = arith.constant 80 : index
    %c0_13 = arith.constant 0 : index
    %25 = vector.load %arg2[%c80, %c0_13] : memref<304x128xbf16, #tpu.memory_space<vmem>>, vector<32x32xbf16>
    %cst_14 = arith.constant dense<0.000000e+00> : vector<80x32xf32>
    %26 = tpu.matmul %24, %25, %cst_14 {dimension_numbers = #tpu.dot_dimension_numbers<[1], [0], [0], [1], [0, 0, 1, 1], [], []>} : vector<80x32xbf16>, vector<32x32xbf16>, vector<80x32xf32> -> vector<80x32xf32>
    %27 = arith.addf %22, %26 : vector<80x32xf32>
    %c1 = arith.constant 1 : index
    %c0_15 = arith.constant 0 : index
    %28 = vector.load %arg3[%c1, %c0_15] : memref<8x128xf32, #tpu.memory_space<vmem>>, vector<1x32xf32>
    %29 = vector.broadcast %28 : vector<1x32xf32> to vector<80x32xf32>
    %30 = arith.addf %27, %29 : vector<80x32xf32>
    %cst_16 = arith.constant 0.000000e+00 : f32
    %31 = vector.broadcast %cst_16 : f32 to vector<80x32xf32>
    %32 = arith.maximumf %30, %31 : vector<80x32xf32>
    %33 = vector.extract_strided_slice %32 {offsets = [0, 0], sizes = [16, 32], strides = [1, 1]} : vector<80x32xf32> to vector<16x32xf32>
    %34 = arith.truncf %33 : vector<16x32xf32> to vector<16x32xbf16>
    %c112 = arith.constant 112 : index
    %c0_17 = arith.constant 0 : index
    %35 = vector.load %arg2[%c112, %c0_17] : memref<304x128xbf16, #tpu.memory_space<vmem>>, vector<32x32xbf16>
    %cst_18 = arith.constant dense<0.000000e+00> : vector<16x32xf32>
    %36 = tpu.matmul %34, %35, %cst_18 {dimension_numbers = #tpu.dot_dimension_numbers<[1], [0], [0], [1], [0, 0, 1, 1], [], []>} : vector<16x32xbf16>, vector<32x32xbf16>, vector<16x32xf32> -> vector<16x32xf32>
    %37 = vector.extract_strided_slice %32 {offsets = [16, 0], sizes = [16, 32], strides = [1, 1]} : vector<80x32xf32> to vector<16x32xf32>
    %38 = arith.truncf %37 : vector<16x32xf32> to vector<16x32xbf16>
    %c144 = arith.constant 144 : index
    %c0_19 = arith.constant 0 : index
    %39 = vector.load %arg2[%c144, %c0_19] : memref<304x128xbf16, #tpu.memory_space<vmem>>, vector<32x32xbf16>
    %cst_20 = arith.constant dense<0.000000e+00> : vector<16x32xf32>
    %40 = tpu.matmul %38, %39, %cst_20 {dimension_numbers = #tpu.dot_dimension_numbers<[1], [0], [0], [1], [0, 0, 1, 1], [], []>} : vector<16x32xbf16>, vector<32x32xbf16>, vector<16x32xf32> -> vector<16x32xf32>
    %41 = arith.addf %36, %40 : vector<16x32xf32>
    %42 = vector.extract_strided_slice %32 {offsets = [32, 0], sizes = [16, 32], strides = [1, 1]} : vector<80x32xf32> to vector<16x32xf32>
    %43 = arith.truncf %42 : vector<16x32xf32> to vector<16x32xbf16>
    %c176 = arith.constant 176 : index
    %c0_21 = arith.constant 0 : index
    %44 = vector.load %arg2[%c176, %c0_21] : memref<304x128xbf16, #tpu.memory_space<vmem>>, vector<32x32xbf16>
    %cst_22 = arith.constant dense<0.000000e+00> : vector<16x32xf32>
    %45 = tpu.matmul %43, %44, %cst_22 {dimension_numbers = #tpu.dot_dimension_numbers<[1], [0], [0], [1], [0, 0, 1, 1], [], []>} : vector<16x32xbf16>, vector<32x32xbf16>, vector<16x32xf32> -> vector<16x32xf32>
    %46 = arith.addf %41, %45 : vector<16x32xf32>
    %47 = vector.extract_strided_slice %32 {offsets = [48, 0], sizes = [16, 32], strides = [1, 1]} : vector<80x32xf32> to vector<16x32xf32>
    %48 = arith.truncf %47 : vector<16x32xf32> to vector<16x32xbf16>
    %c208 = arith.constant 208 : index
    %c0_23 = arith.constant 0 : index
    %49 = vector.load %arg2[%c208, %c0_23] : memref<304x128xbf16, #tpu.memory_space<vmem>>, vector<32x32xbf16>
    %cst_24 = arith.constant dense<0.000000e+00> : vector<16x32xf32>
    %50 = tpu.matmul %48, %49, %cst_24 {dimension_numbers = #tpu.dot_dimension_numbers<[1], [0], [0], [1], [0, 0, 1, 1], [], []>} : vector<16x32xbf16>, vector<32x32xbf16>, vector<16x32xf32> -> vector<16x32xf32>
    %51 = arith.addf %46, %50 : vector<16x32xf32>
    %52 = vector.extract_strided_slice %32 {offsets = [64, 0], sizes = [16, 32], strides = [1, 1]} : vector<80x32xf32> to vector<16x32xf32>
    %53 = arith.truncf %52 : vector<16x32xf32> to vector<16x32xbf16>
    %c240 = arith.constant 240 : index
    %c0_25 = arith.constant 0 : index
    %54 = vector.load %arg2[%c240, %c0_25] : memref<304x128xbf16, #tpu.memory_space<vmem>>, vector<32x32xbf16>
    %cst_26 = arith.constant dense<0.000000e+00> : vector<16x32xf32>
    %55 = tpu.matmul %53, %54, %cst_26 {dimension_numbers = #tpu.dot_dimension_numbers<[1], [0], [0], [1], [0, 0, 1, 1], [], []>} : vector<16x32xbf16>, vector<32x32xbf16>, vector<16x32xf32> -> vector<16x32xf32>
    %56 = arith.addf %51, %55 : vector<16x32xf32>
    %c2 = arith.constant 2 : index
    %c0_27 = arith.constant 0 : index
    %57 = vector.load %arg3[%c2, %c0_27] : memref<8x128xf32, #tpu.memory_space<vmem>>, vector<1x32xf32>
    %58 = vector.broadcast %57 : vector<1x32xf32> to vector<16x32xf32>
    %59 = arith.addf %56, %58 : vector<16x32xf32>
    %cst_28 = arith.constant 0.000000e+00 : f32
    %60 = vector.broadcast %cst_28 : f32 to vector<16x32xf32>
    %61 = arith.maximumf %59, %60 : vector<16x32xf32>
    %62 = arith.truncf %61 : vector<16x32xf32> to vector<16x32xbf16>
    %c272 = arith.constant 272 : index
    %c0_29 = arith.constant 0 : index
    %63 = vector.load %arg2[%c272, %c0_29] : memref<304x128xbf16, #tpu.memory_space<vmem>>, vector<32x128xbf16>
    %cst_30 = arith.constant dense<0.000000e+00> : vector<16x128xf32>
    %64 = tpu.matmul %62, %63, %cst_30 {dimension_numbers = #tpu.dot_dimension_numbers<[1], [0], [0], [1], [0, 0, 1, 1], [], []>} : vector<16x32xbf16>, vector<32x128xbf16>, vector<16x128xf32> -> vector<16x128xf32>
    %c3 = arith.constant 3 : index
    %c0_31 = arith.constant 0 : index
    %65 = vector.load %arg3[%c3, %c0_31] : memref<8x128xf32, #tpu.memory_space<vmem>>, vector<1x128xf32>
    %66 = vector.broadcast %65 : vector<1x128xf32> to vector<16x128xf32>
    %67 = arith.addf %64, %66 : vector<16x128xf32>
    %68 = arith.truncf %67 : vector<16x128xf32> to vector<16x128xbf16>
    %c0_32 = arith.constant 0 : index
    %c0_33 = arith.constant 0 : index
    %69 = vector.load %arg4[%c0_32, %c0_33] : memref<16x128xbf16, #tpu.memory_space<vmem>>, vector<16x128xbf16>
    tpu.vector_store %arg4[%c0_32, %c0_33], %68 {strides = array<i32>} : memref<16x128xbf16, #tpu.memory_space<vmem>>, vector<16x128xbf16>,
    return
  }
  func.func @transform_0(%arg0: i32) -> (i32, i32, i32) {
    %c0_i32 = arith.constant 0 : i32
    %c0_i32_0 = arith.constant 0 : i32
    %c0_i32_1 = arith.constant 0 : i32
    return %arg0, %c0_i32, %c0_i32_0 : i32, i32, i32
  }
  func.func @transform_1(%arg0: i32) -> (i32, i32) {
    %c0_i32 = arith.constant 0 : i32
    %c0_i32_0 = arith.constant 0 : i32
    %c0_i32_1 = arith.constant 0 : i32
    return %c0_i32, %c0_i32_0 : i32, i32
  }
  func.func @transform_2(%arg0: i32) -> (i32, i32) {
    %c0_i32 = arith.constant 0 : i32
    %c0_i32_0 = arith.constant 0 : i32
    %c0_i32_1 = arith.constant 0 : i32
    return %c0_i32, %c0_i32_0 : i32, i32
  }
  func.func @transform_3(%arg0: i32) -> (i32, i32) {
    %c0_i32 = arith.constant 0 : i32
    %c0_i32_0 = arith.constant 0 : i32
    return %arg0, %c0_i32 : i32, i32
  }
}

</mosaic_0001>

<llo_original>
// kernel: conv_agent_forward.1
$region0: #{conv_agent_forward.1}
  #allocation0 [shape = 'u32[]', space=smem, size = 0x4, offset = 0x4, fixed_abs, tag = 'smem constant byte address 0x4 - core index']
  #allocation1 [shape = 'u32[144,128]{1,0:T(1,128)}', space=vmem, size = 0x12000, scoped, tag = 'internal scratch']
  %s0 = inlined_call_operand.vmem [shape: bf16[1,128,4], index: 0, kind: input, shape index: {}]
  %s1 = inlined_call_operand.vmem [shape: bf16[304,128], index: 1, kind: input, shape index: {}]
  %s2 = inlined_call_operand.vmem [shape: f32[8,128], index: 2, kind: input, shape index: {}]
  %s3 = inlined_call_operand.vmem [shape: bf16[16,128], index: 3, kind: output, shape index: {}]
  %s4 = sld [smem:[#allocation0]]
  $region22: #{conv_agent_forward.1} parent=0
    _
  %s6 = ssub.s32 1, %s4
  %s7 = scalar_select 0, %s6, %s4
  // Predicated region
  $region2: #{conv_agent_forward.1} parent=0 // pred_check
    _
  $region3: #{conv_agent_forward.1} parent=0 // pred_check_branch
    %9 = sbr.rel (0) target = $region5
  $region4: #{conv_agent_forward.1} parent=0 // pred_region
    _
  $region5: #{conv_agent_forward.1} parent=0 // pred_fallthru
    _
  // Predicated region
  $region6: #{conv_agent_forward.1} parent=0 // pred_check
    _
  $region7: #{conv_agent_forward.1} parent=0 // pred_check_branch
    %11 = sbr.rel (0) target = $region9
  $region8: #{conv_agent_forward.1} parent=0 // pred_region
    _
  $region9: #{conv_agent_forward.1} parent=0 // pred_fallthru
    _
  // Predicated region
  $region10: #{conv_agent_forward.1} parent=0 // pred_check
    _
  $region11: #{conv_agent_forward.1} parent=0 // pred_check_branch
    %13 = sbr.rel (0) target = $region13
  $region12: #{conv_agent_forward.1} parent=0 // pred_region
    _
  $region13: #{conv_agent_forward.1} parent=0 // pred_fallthru
    _
  %v15 = vld [vmem:[%s0] sm:$0xf]
  %v16 = vld [vmem:[%s0 + $0x4] sm:$0xf]
  %v17 = vld [vmem:[%s0 + $0x8] sm:$0xf]
  %v18 = vld [vmem:[%s0 + $0xc] sm:$0xf]
  %v19 = vld [vmem:[%s0 + $0x10] sm:$0xf]
  %v20 = vld [vmem:[%s0 + $0x14] sm:$0xf]
  %v21 = vld [vmem:[%s0 + $0x18] sm:$0xf]
  %v22 = vld [vmem:[%s0 + $0x1c] sm:$0xf]
  %v23 = vld [vmem:[%s0 + $0x20] sm:$0xf]
  %v24 = vld [vmem:[%s0 + $0x24] sm:$0xf]
  %v25 = vld [vmem:[%s0 + $0x28] sm:$0xf]
  %v26 = vld [vmem:[%s0 + $0x2c] sm:$0xf]
  %v27 = vld [vmem:[%s0 + $0x30] sm:$0xf]
  %v28 = vld [vmem:[%s0 + $0x34] sm:$0xf]
  %v29 = vld [vmem:[%s0 + $0x38] sm:$0xf]
  %v30 = vld [vmem:[%s0 + $0x3c] sm:$0xf]
  %v31 = vld [vmem:[%s1] sm:$0x3]
  %v32 = vld [vmem:[%s1] sm:$0xc]
  %v47 = vunpack.c.l.b16 %v17
  %v48 = vunpack.c.l.b16 %v18
  %v49 = vunpack.c.l.b16 %v19
  %v50 = vunpack.c.l.b16 %v20
  %v51 = vunpack.c.l.b16 %v21
  %v52 = vunpack.c.l.b16 %v22
  %v53 = vunpack.c.l.b16 %v23
  %v54 = vunpack.c.l.b16 %v24
  %v55 = vunpack.c.l.b16 %v25
  %v56 = vunpack.c.l.b16 %v26
  %v57 = vunpack.c.l.b16 %v27
  %v58 = vunpack.c.l.b16 %v28
  %v59 = vunpack.c.l.b16 %v29
  %v60 = vunpack.c.l.b16 %v30
  %v61 = vpack.c.b16 %v48, %v47
  %v62 = vpack.c.b16 %v50, %v49
  %v63 = vpack.c.b16 %v52, %v51
  %v64 = vpack.c.b16 %v54, %v53
  %v65 = vpack.c.b16 %v56, %v55
  %v66 = vpack.c.b16 %v58, %v57
  %v67 = vpack.c.b16 %v60, %v59
  %v69 = vunpack.c.l.b16 %v32
  %v70 = vpack.c.b16 %v69, %v69
  %v71 = vrot.slane %v70, 2
  %vm72 = vcmask 31744
  %v74 = vsel %vm72, %v61, 0
  %v77 = vsel %vm72, %v62, 0
  %v80 = vsel %vm72, %v63, 0
  %v83 = vsel %vm72, %v64, 0
  %v86 = vsel %vm72, %v65, 0
  %v89 = vsel %vm72, %v66, 0
  %v92 = vsel %vm72, %v67, 0
  %vm94 = vcmask 1041408
  %v96 = vsel %vm94, %v71, 0
  %98 = vmatprep.subr.bf16.mxu0 0
  %99 = vmatpush1.bf16.msra.mxu0 0
  %100 = vmatprep.subr.bf16.mxu0 0
  %101 = vmatpush1.bf16.msra.mxu0 0
  %102 = vmatprep.subr.bf16.mxu0 0
  %103 = vmatpush1.bf16.msra.mxu0 0
  %104 = vmatprep.subr.bf16.mxu0 0
  %105 = vmatpush1.bf16.msra.mxu0 0
  %106 = vmatprep.subr.bf16.mxu0 0
  %107 = vmatpush1.bf16.msra.mxu0 0
  %108 = vmatprep.subr.bf16.mxu0 0
  %109 = vmatpush1.bf16.msra.mxu0 0
  %110 = vmatprep.subr.bf16.mxu0 0
  %111 = vmatpush1.bf16.msra.mxu0 0
  %112 = vmatprep.subr.bf16.mxu0 0
  %113 = vmatpush1.bf16.msra.mxu0 %v96
  %114 = vmatprep.subr.bf16.mxu0 0
  %115 = vmatpush2.bf16.msra.mxu0 0
  %116 = vmatprep.subr.bf16.mxu0 0
  %117 = vmatpush2.bf16.msra.mxu0 0
  %118 = vmatprep.subr.bf16.mxu0 0
  %119 = vmatpush2.bf16.msra.mxu0 0
  %120 = vmatprep.subr.bf16.mxu0 0
  %121 = vmatpush2.bf16.msra.mxu0 0
  %122 = vmatprep.subr.bf16.mxu0 0
  %123 = vmatpush2.bf16.msra.mxu0 0
  %124 = vmatprep.subr.bf16.mxu0 0
  %125 = vmatpush2.bf16.msra.mxu0 0
  %126 = vmatprep.subr.bf16.mxu0 0
  %127 = vmatpush2.bf16.msra.mxu0 0
  %128 = vmatprep.subr.bf16.mxu0 0
  %129 = vmatpush2.bf16.msra.mxu0 0
  %130 = vmatprep.mubr.bf16.mxu0 0
  %131 = vmatmul.mubr.bf16.gmra.mxu0 %v74
  %v132 = vpop.f32.mrf.mxu0
  %v133 = vadd.f32 0.0, %v132
  %v134 = vpop.f32.mrf.mxu0
  %v135 = vpop.f32.mrf.mxu0
  %v136 = vadd.f32 0.0, %v135
  %v137 = vpop.f32.mrf.mxu0
  %138 = vmatprep.mubr.bf16.mxu0 0
  %139 = vmatmul.mubr.bf16.gmra.mxu0 %v77
  %v140 = vpop.f32.mrf.mxu0
  %v141 = vadd.f32 0.0, %v140
  %v142 = vpop.f32.mrf.mxu0
  %v143 = vpop.f32.mrf.mxu0
  %v144 = vadd.f32 0.0, %v143
  %v145 = vpop.f32.mrf.mxu0
  %146 = vmatprep.mubr.bf16.mxu0 0
  %147 = vmatmul.mubr.bf16.gmra.mxu0 %v80
  %v148 = vpop.f32.mrf.mxu0
  %v149 = vadd.f32 0.0, %v148
  %v150 = vpop.f32.mrf.mxu0
  %v151 = vpop.f32.mrf.mxu0
  %v152 = vadd.f32 0.0, %v151
  %v153 = vpop.f32.mrf.mxu0
  %154 = vmatprep.mubr.bf16.mxu0 0
  %155 = vmatmul.mubr.bf16.gmra.mxu0 %v83
  %v156 = vpop.f32.mrf.mxu0
  %v157 = vadd.f32 0.0, %v156
  %v158 = vpop.f32.mrf.mxu0
  %v159 = vpop.f32.mrf.mxu0
  %v160 = vadd.f32 0.0, %v159
  %v161 = vpop.f32.mrf.mxu0
  %162 = vmatprep.mubr.bf16.mxu0 0
  %163 = vmatmul.mubr.bf16.gmra.mxu0 %v86
  %v164 = vpop.f32.mrf.mxu0
  %v165 = vadd.f32 0.0, %v164
  %v166 = vpop.f32.mrf.mxu0
  %v167 = vpop.f32.mrf.mxu0
  %v168 = vadd.f32 0.0, %v167
  %v169 = vpop.f32.mrf.mxu0
  %170 = vmatprep.mubr.bf16.mxu0 0
  %171 = vmatmul.mubr.bf16.gmra.mxu0 %v89
  %v172 = vpop.f32.mrf.mxu0
  %v173 = vadd.f32 0.0, %v172
  %v174 = vpop.f32.mrf.mxu0
  %v175 = vpop.f32.mrf.mxu0
  %v176 = vadd.f32 0.0, %v175
  %v177 = vpop.f32.mrf.mxu0
  %178 = vmatprep.mubr.bf16.mxu0 0
  %179 = vmatmul.mubr.bf16.gmra.mxu0 %v92
  %v180 = vpop.f32.mrf.mxu0
  %v181 = vadd.f32 0.0, %v180
  %v182 = vpop.f32.mrf.mxu0
  %v183 = vpop.f32.mrf.mxu0
  %v184 = vadd.f32 0.0, %v183
  %v185 = vpop.f32.mrf.mxu0
  %186 = vdwg.mxu0
  %v189 = vunpack.c.l.b16 %v15
  %v190 = vunpack.c.l.b16 %v16
  %v191 = vpack.c.b16 %v190, %v189
  %v193 = vsel %vm72, %v191, 0
  %v196 = vsel %vm94, %v31, 0
  %198 = vmatprep.subr.bf16.mxu0 0
  %199 = vmatpush1.bf16.msra.mxu0 0
  %200 = vmatprep.subr.bf16.mxu0 0
  %201 = vmatpush1.bf16.msra.mxu0 0
  %202 = vmatprep.subr.bf16.mxu0 0
  %203 = vmatpush1.bf16.msra.mxu0 0
  %204 = vmatprep.subr.bf16.mxu0 0
  %205 = vmatpush1.bf16.msra.mxu0 0
  %206 = vmatprep.subr.bf16.mxu0 0
  %207 = vmatpush1.bf16.msra.mxu0 0
  %208 = vmatprep.subr.bf16.mxu0 0
  %209 = vmatpush1.bf16.msra.mxu0 0
  %210 = vmatprep.subr.bf16.mxu0 0
  %211 = vmatpush1.bf16.msra.mxu0 0
  %212 = vmatprep.subr.bf16.mxu0 0
  %213 = vmatpush1.bf16.msra.mxu0 %v196
  %214 = vmatprep.subr.bf16.mxu0 0
  %215 = vmatpush2.bf16.msra.mxu0 0
  %216 = vmatprep.subr.bf16.mxu0 0
  %217 = vmatpush2.bf16.msra.mxu0 0
  %218 = vmatprep.subr.bf16.mxu0 0
  %219 = vmatpush2.bf16.msra.mxu0 0
  %220 = vmatprep.subr.bf16.mxu0 0
  %221 = vmatpush2.bf16.msra.mxu0 0
  %222 = vmatprep.subr.bf16.mxu0 0
  %223 = vmatpush2.bf16.msra.mxu0 0
  %224 = vmatprep.subr.bf16.mxu0 0
  %225 = vmatpush2.bf16.msra.mxu0 0
  %226 = vmatprep.subr.bf16.mxu0 0
  %227 = vmatpush2.bf16.msra.mxu0 0
  %228 = vmatprep.subr.bf16.mxu0 0
  %229 = vmatpush2.bf16.msra.mxu0 0
  %230 = vmatprep.mubr.bf16.mxu0 0
  %231 = vmatmul.mubr.bf16.gmra.mxu0 %v193
  %v232 = vpop.f32.mrf.mxu0
  %v233 = vadd.f32 %v133, %v232
  %v234 = vpop.f32.mrf.mxu0
  %v235 = vpop.f32.mrf.mxu0
  %v236 = vadd.f32 %v136, %v235
  %v237 = vpop.f32.mrf.mxu0
  %238 = vmatprep.mubr.bf16.mxu0 0
  %239 = vmatmul.mubr.bf16.gmra.mxu0 %v74
  %v240 = vpop.f32.mrf.mxu0
  %v241 = vadd.f32 %v141, %v240
  %v242 = vpop.f32.mrf.mxu0
  %v243 = vpop.f32.mrf.mxu0
  %v244 = vadd.f32 %v144, %v243
  %v245 = vpop.f32.mrf.mxu0
  %246 = vmatprep.mubr.bf16.mxu0 0
  %247 = vmatmul.mubr.bf16.gmra.mxu0 %v77
  %v248 = vpop.f32.mrf.mxu0
  %v249 = vadd.f32 %v149, %v248
  %v250 = vpop.f32.mrf.mxu0
  %v251 = vpop.f32.mrf.mxu0
  %v252 = vadd.f32 %v152, %v251
  %v253 = vpop.f32.mrf.mxu0
  %254 = vmatprep.mubr.bf16.mxu0 0
  %255 = vmatmul.mubr.bf16.gmra.mxu0 %v80
  %v256 = vpop.f32.mrf.mxu0
  %v257 = vadd.f32 %v157, %v256
  %v258 = vpop.f32.mrf.mxu0
  %v259 = vpop.f32.mrf.mxu0
  %v260 = vadd.f32 %v160, %v259
  %v261 = vpop.f32.mrf.mxu0
  %262 = vmatprep.mubr.bf16.mxu0 0
  %263 = vmatmul.mubr.bf16.gmra.mxu0 %v83
  %v264 = vpop.f32.mrf.mxu0
  %v265 = vadd.f32 %v165, %v264
  %v266 = vpop.f32.mrf.mxu0
  %v267 = vpop.f32.mrf.mxu0
  %v268 = vadd.f32 %v168, %v267
  %v269 = vpop.f32.mrf.mxu0
  %270 = vmatprep.mubr.bf16.mxu0 0
  %271 = vmatmul.mubr.bf16.gmra.mxu0 %v86
  %v272 = vpop.f32.mrf.mxu0
  %v273 = vadd.f32 %v173, %v272
  %v274 = vpop.f32.mrf.mxu0
  %v275 = vpop.f32.mrf.mxu0
  %v276 = vadd.f32 %v176, %v275
  %v277 = vpop.f32.mrf.mxu0
  %278 = vmatprep.mubr.bf16.mxu0 0
  %279 = vmatmul.mubr.bf16.gmra.mxu0 %v89
  %v280 = vpop.f32.mrf.mxu0
  %v281 = vadd.f32 %v181, %v280
  %v282 = vpop.f32.mrf.mxu0
  %v283 = vpop.f32.mrf.mxu0
  %v284 = vadd.f32 %v184, %v283
  %v285 = vpop.f32.mrf.mxu0
  %286 = vdwg.mxu0
  %v287 = vld [vmem:[%s2] sm:$0x1]
  %v288 = vlaneseq
  %v289 = vshrl.u32 %v288, 7
  %v290 = vsub.s32 0, %v289
  %v291 = vrot.slane %v287, %v290
  %v292 = vadd.f32 %v233, %v291
  %v293 = vadd.f32 %v236, %v291
  %v294 = vadd.f32 %v241, %v291
  %v295 = vadd.f32 %v244, %v291
  %v296 = vadd.f32 %v249, %v291
  %v297 = vadd.f32 %v252, %v291
  %v298 = vadd.f32 %v257, %v291
  %v299 = vadd.f32 %v260, %v291
  %v300 = vadd.f32 %v265, %v291
  %v301 = vadd.f32 %v268, %v291
  %v302 = vadd.f32 %v273, %v291
  %v303 = vadd.f32 %v276, %v291
  %v304 = vadd.f32 %v281, %v291
  %v305 = vadd.f32 %v284, %v291
  %v306 = vmax.f32 %v292, 0.0
  %v307 = vmax.f32 %v293, 0.0
  %v308 = vmax.f32 %v294, 0.0
  %v309 = vmax.f32 %v295, 0.0
  %v310 = vmax.f32 %v296, 0.0
  %v311 = vmax.f32 %v297, 0.0
  %v312 = vmax.f32 %v298, 0.0
  %v313 = vmax.f32 %v299, 0.0
  %v314 = vmax.f32 %v300, 0.0
  %v315 = vmax.f32 %v301, 0.0
  %v316 = vmax.f32 %v302, 0.0
  %v317 = vmax.f32 %v303, 0.0
  %v318 = vmax.f32 %v304, 0.0
  %v319 = vmax.f32 %v305, 0.0
  %v320 = vpack.c.bf16 %v307, %v306
  %v321 = vpack.c.bf16 %v309, %v308
  %v322 = vpack.c.bf16 %v311, %v310
  %v323 = vpack.c.bf16 %v313, %v312
  %v324 = vpack.c.bf16 %v315, %v314
  %v325 = vld [vmem:[%s1 + $0x8] sm:$0xf]
  %v326 = vld [vmem:[%s1 + $0xc] sm:$0xf]
  %v327 = vld [vmem:[%s1 + $0x10] sm:$0xf]
  %v328 = vld [vmem:[%s1 + $0x14] sm:$0xf]
  %v329 = vpack.c.bf16 %v317, %v316
  %v330 = vld [vmem:[%s1 + $0x18] sm:$0xf]
  %v331 = vld [vmem:[%s1 + $0x1c] sm:$0xf]
  %v332 = vld [vmem:[%s1 + $0x20] sm:$0xf]
  %v333 = vld [vmem:[%s1 + $0x24] sm:$0xf]
  %v338 = vunpack.c.l.b16 %v330
  %v339 = vunpack.c.l.b16 %v331
  %v340 = vunpack.c.l.b16 %v332
  %v341 = vunpack.c.l.b16 %v333
  %v342 = vpack.c.b16 %v339, %v338
  %v343 = vpack.c.b16 %v341, %v340
  %vm346 = vcmask 261120
  %v348 = vsel %vm346, %v321, 0
  %v351 = vsel %vm346, %v322, 0
  %v354 = vsel %vm346, %v323, 0
  %v357 = vsel %vm346, %v324, 0
  %v360 = vsel %vm346, %v329, 0
  %362 = vmatprep.subr.bf16.mxu0 0
  %363 = vmatpush1.bf16.msra.mxu0 0
  %364 = vmatprep.subr.bf16.mxu0 0
  %365 = vmatpush1.bf16.msra.mxu0 0
  %366 = vmatprep.subr.bf16.mxu0 0
  %367 = vmatpush1.bf16.msra.mxu0 0
  %368 = vmatprep.subr.bf16.mxu0 0
  %369 = vmatpush1.bf16.msra.mxu0 0
  %370 = vmatprep.subr.bf16.mxu0 0
  %371 = vmatpush1.bf16.msra.mxu0 0
  %372 = vmatprep.subr.bf16.mxu0 0
  %373 = vmatpush1.bf16.msra.mxu0 0
  %374 = vmatprep.subr.bf16.mxu0 0
  %375 = vmatpush1.bf16.msra.mxu0 %v343
  %376 = vmatprep.subr.bf16.mxu0 0
  %377 = vmatpush1.bf16.msra.mxu0 %v342
  %378 = vmatprep.subr.bf16.mxu0 0
  %379 = vmatpush2.bf16.msra.mxu0 0
  %380 = vmatprep.subr.bf16.mxu0 0
  %381 = vmatpush2.bf16.msra.mxu0 0
  %382 = vmatprep.subr.bf16.mxu0 0
  %383 = vmatpush2.bf16.msra.mxu0 0
  %384 = vmatprep.subr.bf16.mxu0 0
  %385 = vmatpush2.bf16.msra.mxu0 0
  %386 = vmatprep.subr.bf16.mxu0 0
  %387 = vmatpush2.bf16.msra.mxu0 0
  %388 = vmatprep.subr.bf16.mxu0 0
  %389 = vmatpush2.bf16.msra.mxu0 0
  %390 = vmatprep.subr.bf16.mxu0 0
  %391 = vmatpush2.bf16.msra.mxu0 0
  %392 = vmatprep.subr.bf16.mxu0 0
  %393 = vmatpush2.bf16.msra.mxu0 0
  %394 = vmatprep.mubr.bf16.mxu0 0
  %395 = vmatmul.mubr.bf16.gmra.mxu0 %v348
  %v396 = vpop.f32.mrf.mxu0
  %v397 = vadd.f32 0.0, %v396
  %v398 = vpop.f32.mrf.mxu0
  %v399 = vpop.f32.mrf.mxu0
  %v400 = vadd.f32 0.0, %v399
  %v401 = vpop.f32.mrf.mxu0
  %402 = vmatprep.mubr.bf16.mxu0 0
  %403 = vmatmul.mubr.bf16.gmra.mxu0 %v351
  %v404 = vpop.f32.mrf.mxu0
  %v405 = vadd.f32 0.0, %v404
  %v406 = vpop.f32.mrf.mxu0
  %v407 = vpop.f32.mrf.mxu0
  %v408 = vadd.f32 0.0, %v407
  %v409 = vpop.f32.mrf.mxu0
  %410 = vmatprep.mubr.bf16.mxu0 0
  %411 = vmatmul.mubr.bf16.gmra.mxu0 %v354
  %v412 = vpop.f32.mrf.mxu0
  %v413 = vadd.f32 0.0, %v412
  %v414 = vpop.f32.mrf.mxu0
  %v415 = vpop.f32.mrf.mxu0
  %v416 = vadd.f32 0.0, %v415
  %v417 = vpop.f32.mrf.mxu0
  %418 = vmatprep.mubr.bf16.mxu0 0
  %419 = vmatmul.mubr.bf16.gmra.mxu0 %v357
  %v420 = vpop.f32.mrf.mxu0
  %v421 = vadd.f32 0.0, %v420
  %v422 = vpop.f32.mrf.mxu0
  %v423 = vpop.f32.mrf.mxu0
  %v424 = vadd.f32 0.0, %v423
  %v425 = vpop.f32.mrf.mxu0
  %426 = vmatprep.mubr.bf16.mxu0 0
  %427 = vmatmul.mubr.bf16.gmra.mxu0 %v360
  %v428 = vpop.f32.mrf.mxu0
  %v429 = vadd.f32 0.0, %v428
  %v430 = vpop.f32.mrf.mxu0
  %v431 = vpop.f32.mrf.mxu0
  %v432 = vadd.f32 0.0, %v431
  %v433 = vpop.f32.mrf.mxu0
  %434 = vdwg.mxu0
  %v439 = vunpack.c.l.b16 %v325
  %v440 = vunpack.c.l.b16 %v326
  %v441 = vunpack.c.l.b16 %v327
  %v442 = vunpack.c.l.b16 %v328
  %v443 = vpack.c.b16 %v440, %v439
  %v444 = vpack.c.b16 %v442, %v441
  %v448 = vsel %vm346, %v320, 0
  %450 = vmatprep.subr.bf16.mxu0 0
  %451 = vmatpush1.bf16.msra.mxu0 0
  %452 = vmatprep.subr.bf16.mxu0 0
  %453 = vmatpush1.bf16.msra.mxu0 0
  %454 = vmatprep.subr.bf16.mxu0 0
  %455 = vmatpush1.bf16.msra.mxu0 0
  %456 = vmatprep.subr.bf16.mxu0 0
  %457 = vmatpush1.bf16.msra.mxu0 0
  %458 = vmatprep.subr.bf16.mxu0 0
  %459 = vmatpush1.bf16.msra.mxu0 0
  %460 = vmatprep.subr.bf16.mxu0 0
  %461 = vmatpush1.bf16.msra.mxu0 0
  %462 = vmatprep.subr.bf16.mxu0 0
  %463 = vmatpush1.bf16.msra.mxu0 %v444
  %464 = vmatprep.subr.bf16.mxu0 0
  %465 = vmatpush1.bf16.msra.mxu0 %v443
  %466 = vmatprep.subr.bf16.mxu0 0
  %467 = vmatpush2.bf16.msra.mxu0 0
  %468 = vmatprep.subr.bf16.mxu0 0
  %469 = vmatpush2.bf16.msra.mxu0 0
  %470 = vmatprep.subr.bf16.mxu0 0
  %471 = vmatpush2.bf16.msra.mxu0 0
  %472 = vmatprep.subr.bf16.mxu0 0
  %473 = vmatpush2.bf16.msra.mxu0 0
  %474 = vmatprep.subr.bf16.mxu0 0
  %475 = vmatpush2.bf16.msra.mxu0 0
  %476 = vmatprep.subr.bf16.mxu0 0
  %477 = vmatpush2.bf16.msra.mxu0 0
  %478 = vmatprep.subr.bf16.mxu0 0
  %479 = vmatpush2.bf16.msra.mxu0 0
  %480 = vmatprep.subr.bf16.mxu0 0
  %481 = vmatpush2.bf16.msra.mxu0 0
  %482 = vmatprep.mubr.bf16.mxu0 0
  %483 = vmatmul.mubr.bf16.gmra.mxu0 %v448
  %v484 = vpop.f32.mrf.mxu0
  %v485 = vadd.f32 %v397, %v484
  %v486 = vpop.f32.mrf.mxu0
  %v487 = vpop.f32.mrf.mxu0
  %v488 = vadd.f32 %v400, %v487
  %v489 = vpop.f32.mrf.mxu0
  %490 = vmatprep.mubr.bf16.mxu0 0
  %491 = vmatmul.mubr.bf16.gmra.mxu0 %v348
  %v492 = vpop.f32.mrf.mxu0
  %v493 = vadd.f32 %v405, %v492
  %v494 = vpop.f32.mrf.mxu0
  %v495 = vpop.f32.mrf.mxu0
  %v496 = vadd.f32 %v408, %v495
  %v497 = vpop.f32.mrf.mxu0
  %498 = vmatprep.mubr.bf16.mxu0 0
  %499 = vmatmul.mubr.bf16.gmra.mxu0 %v351
  %v500 = vpop.f32.mrf.mxu0
  %v501 = vadd.f32 %v413, %v500
  %v502 = vpop.f32.mrf.mxu0
  %v503 = vpop.f32.mrf.mxu0
  %v504 = vadd.f32 %v416, %v503
  %v505 = vpop.f32.mrf.mxu0
  %506 = vmatprep.mubr.bf16.mxu0 0
  %507 = vmatmul.mubr.bf16.gmra.mxu0 %v354
  %v508 = vpop.f32.mrf.mxu0
  %v509 = vadd.f32 %v421, %v508
  %v510 = vpop.f32.mrf.mxu0
  %v511 = vpop.f32.mrf.mxu0
  %v512 = vadd.f32 %v424, %v511
  %v513 = vpop.f32.mrf.mxu0
  %514 = vmatprep.mubr.bf16.mxu0 0
  %515 = vmatmul.mubr.bf16.gmra.mxu0 %v357
  %v516 = vpop.f32.mrf.mxu0
  %v517 = vadd.f32 %v429, %v516
  %v518 = vpop.f32.mrf.mxu0
  %v519 = vpop.f32.mrf.mxu0
  %v520 = vadd.f32 %v432, %v519
  %v521 = vpop.f32.mrf.mxu0
  %522 = vdwg.mxu0
  %v523 = vpack.c.bf16 %v319, %v318
  %v524 = vld [vmem:[%s1 + $0x28] sm:$0xf]
  %v525 = vld [vmem:[%s1 + $0x2c] sm:$0xf]
  %v526 = vld [vmem:[%s1 + $0x30] sm:$0xf]
  %v527 = vld [vmem:[%s1 + $0x34] sm:$0xf]
  %v532 = vunpack.c.l.b16 %v524
  %v533 = vunpack.c.l.b16 %v525
  %v534 = vunpack.c.l.b16 %v526
  %v535 = vunpack.c.l.b16 %v527
  %v536 = vpack.c.b16 %v533, %v532
  %v537 = vpack.c.b16 %v535, %v534
  %v541 = vsel %vm346, %v523, 0
  %543 = vmatprep.subr.bf16.mxu0 0
  %544 = vmatpush1.bf16.msra.mxu0 0
  %545 = vmatprep.subr.bf16.mxu0 0
  %546 = vmatpush1.bf16.msra.mxu0 0
  %547 = vmatprep.subr.bf16.mxu0 0
  %548 = vmatpush1.bf16.msra.mxu0 0
  %549 = vmatprep.subr.bf16.mxu0 0
  %550 = vmatpush1.bf16.msra.mxu0 0
  %551 = vmatprep.subr.bf16.mxu0 0
  %552 = vmatpush1.bf16.msra.mxu0 0
  %553 = vmatprep.subr.bf16.mxu0 0
  %554 = vmatpush1.bf16.msra.mxu0 0
  %555 = vmatprep.subr.bf16.mxu0 0
  %556 = vmatpush1.bf16.msra.mxu0 %v537
  %557 = vmatprep.subr.bf16.mxu0 0
  %558 = vmatpush1.bf16.msra.mxu0 %v536
  %559 = vmatprep.subr.bf16.mxu0 0
  %560 = vmatpush2.bf16.msra.mxu0 0
  %561 = vmatprep.subr.bf16.mxu0 0
  %562 = vmatpush2.bf16.msra.mxu0 0
  %563 = vmatprep.subr.bf16.mxu0 0
  %564 = vmatpush2.bf16.msra.mxu0 0
  %565 = vmatprep.subr.bf16.mxu0 0
  %566 = vmatpush2.bf16.msra.mxu0 0
  %567 = vmatprep.subr.bf16.mxu0 0
  %568 = vmatpush2.bf16.msra.mxu0 0
  %569 = vmatprep.subr.bf16.mxu0 0
  %570 = vmatpush2.bf16.msra.mxu0 0
  %571 = vmatprep.subr.bf16.mxu0 0
  %572 = vmatpush2.bf16.msra.mxu0 0
  %573 = vmatprep.subr.bf16.mxu0 0
  %574 = vmatpush2.bf16.msra.mxu0 0
  %575 = vmatprep.mubr.bf16.mxu0 0
  %576 = vmatmul.mubr.bf16.gmra.mxu0 %v351
  %v577 = vpop.f32.mrf.mxu0
  %v578 = vadd.f32 0.0, %v577
  %v579 = vpop.f32.mrf.mxu0
  %v580 = vpop.f32.mrf.mxu0
  %v581 = vadd.f32 0.0, %v580
  %v582 = vpop.f32.mrf.mxu0
  %583 = vmatprep.mubr.bf16.mxu0 0
  %584 = vmatmul.mubr.bf16.gmra.mxu0 %v354
  %v585 = vpop.f32.mrf.mxu0
  %v586 = vadd.f32 0.0, %v585
  %v587 = vpop.f32.mrf.mxu0
  %v588 = vpop.f32.mrf.mxu0
  %v589 = vadd.f32 0.0, %v588
  %v590 = vpop.f32.mrf.mxu0
  %591 = vmatprep.mubr.bf16.mxu0 0
  %592 = vmatmul.mubr.bf16.gmra.mxu0 %v357
  %v593 = vpop.f32.mrf.mxu0
  %v594 = vadd.f32 0.0, %v593
  %v595 = vpop.f32.mrf.mxu0
  %v596 = vpop.f32.mrf.mxu0
  %v597 = vadd.f32 0.0, %v596
  %v598 = vpop.f32.mrf.mxu0
  %599 = vmatprep.mubr.bf16.mxu0 0
  %600 = vmatmul.mubr.bf16.gmra.mxu0 %v360
  %v601 = vpop.f32.mrf.mxu0
  %v602 = vadd.f32 0.0, %v601
  %v603 = vpop.f32.mrf.mxu0
  %v604 = vpop.f32.mrf.mxu0
  %v605 = vadd.f32 0.0, %v604
  %v606 = vpop.f32.mrf.mxu0
  %607 = vmatprep.mubr.bf16.mxu0 0
  %608 = vmatmul.mubr.bf16.gmra.mxu0 %v541
  %v609 = vpop.f32.mrf.mxu0
  %v610 = vadd.f32 0.0, %v609
  %v611 = vpop.f32.mrf.mxu0
  %v612 = vpop.f32.mrf.mxu0
  %v613 = vadd.f32 0.0, %v612
  %v614 = vpop.f32.mrf.mxu0
  %615 = vdwg.mxu0
  %v616 = vadd.f32 %v485, %v578
  %v617 = vadd.f32 %v488, %v581
  %v618 = vadd.f32 %v493, %v586
  %v619 = vadd.f32 %v496, %v589
  %v620 = vadd.f32 %v501, %v594
  %v621 = vadd.f32 %v504, %v597
  %v622 = vadd.f32 %v509, %v602
  %v623 = vadd.f32 %v512, %v605
  %v624 = vadd.f32 %v517, %v610
  %v625 = vadd.f32 %v520, %v613
  %v626 = vld [vmem:[%s2 + $0x1] sm:$0x1]
  %v627 = vlaneseq
  %v628 = vshrl.u32 %v627, 7
  %v629 = vsub.s32 0, %v628
  %v630 = vrot.slane %v626, %v629
  %v631 = vadd.f32 %v616, %v630
  %v632 = vadd.f32 %v617, %v630
  %v633 = vadd.f32 %v618, %v630
  %v634 = vadd.f32 %v619, %v630
  %v635 = vadd.f32 %v620, %v630
  %v636 = vadd.f32 %v621, %v630
  %v637 = vadd.f32 %v622, %v630
  %v638 = vadd.f32 %v623, %v630
  %v639 = vadd.f32 %v624, %v630
  %v640 = vadd.f32 %v625, %v630
  %v641 = vmax.f32 %v631, 0.0
  %v642 = vmax.f32 %v632, 0.0
  %v643 = vmax.f32 %v633, 0.0
  %v644 = vmax.f32 %v634, 0.0
  %v645 = vmax.f32 %v635, 0.0
  %v646 = vmax.f32 %v636, 0.0
  %v647 = vmax.f32 %v637, 0.0
  %v648 = vmax.f32 %v638, 0.0
  %v649 = vmax.f32 %v639, 0.0
  %v650 = vmax.f32 %v640, 0.0
  %v651 = vpack.c.bf16 %v642, %v641
  %v652 = vld [vmem:[%s1 + $0x38] sm:$0xf]
  %v653 = vld [vmem:[%s1 + $0x3c] sm:$0xf]
  %v654 = vld [vmem:[%s1 + $0x40] sm:$0xf]
  %v655 = vld [vmem:[%s1 + $0x44] sm:$0xf]
  %v656 = vpack.c.bf16 %v644, %v643
  %v657 = vld [vmem:[%s1 + $0x48] sm:$0xf]
  %v658 = vld [vmem:[%s1 + $0x4c] sm:$0xf]
  %v659 = vld [vmem:[%s1 + $0x50] sm:$0xf]
  %v660 = vld [vmem:[%s1 + $0x54] sm:$0xf]
  %v665 = vunpack.c.l.b16 %v657
  %v666 = vunpack.c.l.b16 %v658
  %v667 = vunpack.c.l.b16 %v659
  %v668 = vunpack.c.l.b16 %v660
  %v669 = vpack.c.b16 %v666, %v665
  %v670 = vpack.c.b16 %v668, %v667
  %v674 = vsel %vm346, %v656, 0
  %676 = vmatprep.subr.bf16.mxu0 0
  %677 = vmatpush1.bf16.msra.mxu0 0
  %678 = vmatprep.subr.bf16.mxu0 0
  %679 = vmatpush1.bf16.msra.mxu0 0
  %680 = vmatprep.subr.bf16.mxu0 0
  %681 = vmatpush1.bf16.msra.mxu0 0
  %682 = vmatprep.subr.bf16.mxu0 0
  %683 = vmatpush1.bf16.msra.mxu0 0
  %684 = vmatprep.subr.bf16.mxu0 0
  %685 = vmatpush1.bf16.msra.mxu0 0
  %686 = vmatprep.subr.bf16.mxu0 0
  %687 = vmatpush1.bf16.msra.mxu0 0
  %688 = vmatprep.subr.bf16.mxu0 0
  %689 = vmatpush1.bf16.msra.mxu0 %v670
  %690 = vmatprep.subr.bf16.mxu0 0
  %691 = vmatpush1.bf16.msra.mxu0 %v669
  %692 = vmatprep.subr.bf16.mxu0 0
  %693 = vmatpush2.bf16.msra.mxu0 0
  %694 = vmatprep.subr.bf16.mxu0 0
  %695 = vmatpush2.bf16.msra.mxu0 0
  %696 = vmatprep.subr.bf16.mxu0 0
  %697 = vmatpush2.bf16.msra.mxu0 0
  %698 = vmatprep.subr.bf16.mxu0 0
  %699 = vmatpush2.bf16.msra.mxu0 0
  %700 = vmatprep.subr.bf16.mxu0 0
  %701 = vmatpush2.bf16.msra.mxu0 0
  %702 = vmatprep.subr.bf16.mxu0 0
  %703 = vmatpush2.bf16.msra.mxu0 0
  %704 = vmatprep.subr.bf16.mxu0 0
  %705 = vmatpush2.bf16.msra.mxu0 0
  %706 = vmatprep.subr.bf16.mxu0 0
  %707 = vmatpush2.bf16.msra.mxu0 0
  %708 = vmatprep.mubr.bf16.mxu0 0
  %709 = vmatmul.mubr.bf16.gmra.mxu0 %v674
  %v710 = vpop.f32.mrf.mxu0
  %v711 = vadd.f32 0.0, %v710
  %v712 = vpop.f32.mrf.mxu0
  %v713 = vpop.f32.mrf.mxu0
  %v714 = vadd.f32 0.0, %v713
  %v715 = vpop.f32.mrf.mxu0
  %716 = vdwg.mxu0
  %v721 = vunpack.c.l.b16 %v652
  %v722 = vunpack.c.l.b16 %v653
  %v723 = vunpack.c.l.b16 %v654
  %v724 = vunpack.c.l.b16 %v655
  %v725 = vpack.c.b16 %v722, %v721
  %v726 = vpack.c.b16 %v724, %v723
  %v730 = vsel %vm346, %v651, 0
  %732 = vmatprep.subr.bf16.mxu0 0
  %733 = vmatpush1.bf16.msra.mxu0 0
  %734 = vmatprep.subr.bf16.mxu0 0
  %735 = vmatpush1.bf16.msra.mxu0 0
  %736 = vmatprep.subr.bf16.mxu0 0
  %737 = vmatpush1.bf16.msra.mxu0 0
  %738 = vmatprep.subr.bf16.mxu0 0
  %739 = vmatpush1.bf16.msra.mxu0 0
  %740 = vmatprep.subr.bf16.mxu0 0
  %741 = vmatpush1.bf16.msra.mxu0 0
  %742 = vmatprep.subr.bf16.mxu0 0
  %743 = vmatpush1.bf16.msra.mxu0 0
  %744 = vmatprep.subr.bf16.mxu0 0
  %745 = vmatpush1.bf16.msra.mxu0 %v726
  %746 = vmatprep.subr.bf16.mxu0 0
  %747 = vmatpush1.bf16.msra.mxu0 %v725
  %748 = vmatprep.subr.bf16.mxu0 0
  %749 = vmatpush2.bf16.msra.mxu0 0
  %750 = vmatprep.subr.bf16.mxu0 0
  %751 = vmatpush2.bf16.msra.mxu0 0
  %752 = vmatprep.subr.bf16.mxu0 0
  %753 = vmatpush2.bf16.msra.mxu0 0
  %754 = vmatprep.subr.bf16.mxu0 0
  %755 = vmatpush2.bf16.msra.mxu0 0
  %756 = vmatprep.subr.bf16.mxu0 0
  %757 = vmatpush2.bf16.msra.mxu0 0
  %758 = vmatprep.subr.bf16.mxu0 0
  %759 = vmatpush2.bf16.msra.mxu0 0
  %760 = vmatprep.subr.bf16.mxu0 0
  %761 = vmatpush2.bf16.msra.mxu0 0
  %762 = vmatprep.subr.bf16.mxu0 0
  %763 = vmatpush2.bf16.msra.mxu0 0
  %764 = vmatprep.mubr.bf16.mxu0 0
  %765 = vmatmul.mubr.bf16.gmra.mxu0 %v730
  %v766 = vpop.f32.mrf.mxu0
  %v767 = vadd.f32 %v711, %v766
  %v768 = vpop.f32.mrf.mxu0
  %v769 = vpop.f32.mrf.mxu0
  %v770 = vadd.f32 %v714, %v769
  %v771 = vpop.f32.mrf.mxu0
  %772 = vdwg.mxu0
  %v773 = vpack.c.bf16 %v646, %v645
  %v774 = vld [vmem:[%s1 + $0x58] sm:$0xf]
  %v775 = vld [vmem:[%s1 + $0x5c] sm:$0xf]
  %v776 = vld [vmem:[%s1 + $0x60] sm:$0xf]
  %v777 = vld [vmem:[%s1 + $0x64] sm:$0xf]
  %v782 = vunpack.c.l.b16 %v774
  %v783 = vunpack.c.l.b16 %v775
  %v784 = vunpack.c.l.b16 %v776
  %v785 = vunpack.c.l.b16 %v777
  %v786 = vpack.c.b16 %v783, %v782
  %v787 = vpack.c.b16 %v785, %v784
  %v791 = vsel %vm346, %v773, 0
  %793 = vmatprep.subr.bf16.mxu0 0
  %794 = vmatpush1.bf16.msra.mxu0 0
  %795 = vmatprep.subr.bf16.mxu0 0
  %796 = vmatpush1.bf16.msra.mxu0 0
  %797 = vmatprep.subr.bf16.mxu0 0
  %798 = vmatpush1.bf16.msra.mxu0 0
  %799 = vmatprep.subr.bf16.mxu0 0
  %800 = vmatpush1.bf16.msra.mxu0 0
  %801 = vmatprep.subr.bf16.mxu0 0
  %802 = vmatpush1.bf16.msra.mxu0 0
  %803 = vmatprep.subr.bf16.mxu0 0
  %804 = vmatpush1.bf16.msra.mxu0 0
  %805 = vmatprep.subr.bf16.mxu0 0
  %806 = vmatpush1.bf16.msra.mxu0 %v787
  %807 = vmatprep.subr.bf16.mxu0 0
  %808 = vmatpush1.bf16.msra.mxu0 %v786
  %809 = vmatprep.subr.bf16.mxu0 0
  %810 = vmatpush2.bf16.msra.mxu0 0
  %811 = vmatprep.subr.bf16.mxu0 0
  %812 = vmatpush2.bf16.msra.mxu0 0
  %813 = vmatprep.subr.bf16.mxu0 0
  %814 = vmatpush2.bf16.msra.mxu0 0
  %815 = vmatprep.subr.bf16.mxu0 0
  %816 = vmatpush2.bf16.msra.mxu0 0
  %817 = vmatprep.subr.bf16.mxu0 0
  %818 = vmatpush2.bf16.msra.mxu0 0
  %819 = vmatprep.subr.bf16.mxu0 0
  %820 = vmatpush2.bf16.msra.mxu0 0
  %821 = vmatprep.subr.bf16.mxu0 0
  %822 = vmatpush2.bf16.msra.mxu0 0
  %823 = vmatprep.subr.bf16.mxu0 0
  %824 = vmatpush2.bf16.msra.mxu0 0
  %825 = vmatprep.mubr.bf16.mxu0 0
  %826 = vmatmul.mubr.bf16.gmra.mxu0 %v791
  %v827 = vpop.f32.mrf.mxu0
  %v828 = vadd.f32 0.0, %v827
  %v829 = vpop.f32.mrf.mxu0
  %v830 = vpop.f32.mrf.mxu0
  %v831 = vadd.f32 0.0, %v830
  %v832 = vpop.f32.mrf.mxu0
  %833 = vdwg.mxu0
  %v834 = vadd.f32 %v767, %v828
  %v835 = vadd.f32 %v770, %v831
  %v836 = vpack.c.bf16 %v648, %v647
  %v837 = vld [vmem:[%s1 + $0x68] sm:$0xf]
  %v838 = vld [vmem:[%s1 + $0x6c] sm:$0xf]
  %v839 = vld [vmem:[%s1 + $0x70] sm:$0xf]
  %v840 = vld [vmem:[%s1 + $0x74] sm:$0xf]
  %v845 = vunpack.c.l.b16 %v837
  %v846 = vunpack.c.l.b16 %v838
  %v847 = vunpack.c.l.b16 %v839
  %v848 = vunpack.c.l.b16 %v840
  %v849 = vpack.c.b16 %v846, %v845
  %v850 = vpack.c.b16 %v848, %v847
  %v854 = vsel %vm346, %v836, 0
  %856 = vmatprep.subr.bf16.mxu0 0
  %857 = vmatpush1.bf16.msra.mxu0 0
  %858 = vmatprep.subr.bf16.mxu0 0
  %859 = vmatpush1.bf16.msra.mxu0 0
  %860 = vmatprep.subr.bf16.mxu0 0
  %861 = vmatpush1.bf16.msra.mxu0 0
  %862 = vmatprep.subr.bf16.mxu0 0
  %863 = vmatpush1.bf16.msra.mxu0 0
  %864 = vmatprep.subr.bf16.mxu0 0
  %865 = vmatpush1.bf16.msra.mxu0 0
  %866 = vmatprep.subr.bf16.mxu0 0
  %867 = vmatpush1.bf16.msra.mxu0 0
  %868 = vmatprep.subr.bf16.mxu0 0
  %869 = vmatpush1.bf16.msra.mxu0 %v850
  %870 = vmatprep.subr.bf16.mxu0 0
  %871 = vmatpush1.bf16.msra.mxu0 %v849
  %872 = vmatprep.subr.bf16.mxu0 0
  %873 = vmatpush2.bf16.msra.mxu0 0
  %874 = vmatprep.subr.bf16.mxu0 0
  %875 = vmatpush2.bf16.msra.mxu0 0
  %876 = vmatprep.subr.bf16.mxu0 0
  %877 = vmatpush2.bf16.msra.mxu0 0
  %878 = vmatprep.subr.bf16.mxu0 0
  %879 = vmatpush2.bf16.msra.mxu0 0
  %880 = vmatprep.subr.bf16.mxu0 0
  %881 = vmatpush2.bf16.msra.mxu0 0
  %882 = vmatprep.subr.bf16.mxu0 0
  %883 = vmatpush2.bf16.msra.mxu0 0
  %884 = vmatprep.subr.bf16.mxu0 0
  %885 = vmatpush2.bf16.msra.mxu0 0
  %886 = vmatprep.subr.bf16.mxu0 0
  %887 = vmatpush2.bf16.msra.mxu0 0
  %888 = vmatprep.mubr.bf16.mxu0 0
  %889 = vmatmul.mubr.bf16.gmra.mxu0 %v854
  %v890 = vpop.f32.mrf.mxu0
  %v891 = vadd.f32 0.0, %v890
  %v892 = vpop.f32.mrf.mxu0
  %v893 = vpop.f32.mrf.mxu0
  %v894 = vadd.f32 0.0, %v893
  %v895 = vpop.f32.mrf.mxu0
  %896 = vdwg.mxu0
  %v897 = vadd.f32 %v834, %v891
  %v898 = vadd.f32 %v835, %v894
  %v899 = vpack.c.bf16 %v650, %v649
  %v900 = vld [vmem:[%s1 + $0x78] sm:$0xf]
  %v901 = vld [vmem:[%s1 + $0x7c] sm:$0xf]
  %v902 = vld [vmem:[%s1 + $0x80] sm:$0xf]
  %v903 = vld [vmem:[%s1 + $0x84] sm:$0xf]
  %v908 = vunpack.c.l.b16 %v900
  %v909 = vunpack.c.l.b16 %v901
  %v910 = vunpack.c.l.b16 %v902
  %v911 = vunpack.c.l.b16 %v903
  %v912 = vpack.c.b16 %v909, %v908
  %v913 = vpack.c.b16 %v911, %v910
  %v917 = vsel %vm346, %v899, 0
  %919 = vmatprep.subr.bf16.mxu0 0
  %920 = vmatpush1.bf16.msra.mxu0 0
  %921 = vmatprep.subr.bf16.mxu0 0
  %922 = vmatpush1.bf16.msra.mxu0 0
  %923 = vmatprep.subr.bf16.mxu0 0
  %924 = vmatpush1.bf16.msra.mxu0 0
  %925 = vmatprep.subr.bf16.mxu0 0
  %926 = vmatpush1.bf16.msra.mxu0 0
  %927 = vmatprep.subr.bf16.mxu0 0
  %928 = vmatpush1.bf16.msra.mxu0 0
  %929 = vmatprep.subr.bf16.mxu0 0
  %930 = vmatpush1.bf16.msra.mxu0 0
  %931 = vmatprep.subr.bf16.mxu0 0
  %932 = vmatpush1.bf16.msra.mxu0 %v913
  %933 = vmatprep.subr.bf16.mxu0 0
  %934 = vmatpush1.bf16.msra.mxu0 %v912
  %935 = vmatprep.subr.bf16.mxu0 0
  %936 = vmatpush2.bf16.msra.mxu0 0
  %937 = vmatprep.subr.bf16.mxu0 0
  %938 = vmatpush2.bf16.msra.mxu0 0
  %939 = vmatprep.subr.bf16.mxu0 0
  %940 = vmatpush2.bf16.msra.mxu0 0
  %941 = vmatprep.subr.bf16.mxu0 0
  %942 = vmatpush2.bf16.msra.mxu0 0
  %943 = vmatprep.subr.bf16.mxu0 0
  %944 = vmatpush2.bf16.msra.mxu0 0
  %945 = vmatprep.subr.bf16.mxu0 0
  %946 = vmatpush2.bf16.msra.mxu0 0
  %947 = vmatprep.subr.bf16.mxu0 0
  %948 = vmatpush2.bf16.msra.mxu0 0
  %949 = vmatprep.subr.bf16.mxu0 0
  %950 = vmatpush2.bf16.msra.mxu0 0
  %951 = vmatprep.mubr.bf16.mxu0 0
  %952 = vmatmul.mubr.bf16.gmra.mxu0 %v917
  %v953 = vpop.f32.mrf.mxu0
  %v954 = vadd.f32 0.0, %v953
  %v955 = vpop.f32.mrf.mxu0
  %v956 = vpop.f32.mrf.mxu0
  %v957 = vadd.f32 0.0, %v956
  %v958 = vpop.f32.mrf.mxu0
  %959 = vdwg.mxu0
  %v960 = vadd.f32 %v897, %v954
  %v961 = vadd.f32 %v898, %v957
  %v962 = vld [vmem:[%s2 + $0x2] sm:$0x1]
  %v963 = vlaneseq
  %v964 = vshrl.u32 %v963, 7
  %v965 = vsub.s32 0, %v964
  %v966 = vrot.slane %v962, %v965
  %v967 = vadd.f32 %v960, %v966
  %v968 = vadd.f32 %v961, %v966
  %v969 = vmax.f32 %v967, 0.0
  %v970 = vmax.f32 %v968, 0.0
  %v971 = vpack.c.bf16 %v970, %v969
  %v972 = vld [vmem:[%s1 + $0x88] sm:$0xf]
  %v973 = vld [vmem:[%s1 + $0x8c] sm:$0xf]
  %v974 = vld [vmem:[%s1 + $0x90] sm:$0xf]
  %v975 = vld [vmem:[%s1 + $0x94] sm:$0xf]
  %v976 = vld [vmem:[%s2 + $0x3] sm:$0x1]
  %v977 = vlaneseq
  %v978 = vshrl.u32 %v977, 7
  %v979 = vsub.s32 0, %v978
  %v980 = vrot.slane %v976, %v979
  %v985 = vunpack.c.l.b16 %v972
  %v986 = vunpack.c.l.b16 %v973
  %v987 = vunpack.c.l.b16 %v974
  %v988 = vunpack.c.l.b16 %v975
  %v989 = vpack.c.b16 %v986, %v985
  %v990 = vpack.c.b16 %v988, %v987
  %v994 = vsel %vm346, %v971, 0
  %996 = vmatprep.subr.bf16.mxu0 0
  %997 = vmatpush1.bf16.msra.mxu0 0
  %998 = vmatprep.subr.bf16.mxu0 0
  %999 = vmatpush1.bf16.msra.mxu0 0
  %1000 = vmatprep.subr.bf16.mxu0 0
  %1001 = vmatpush1.bf16.msra.mxu0 0
  %1002 = vmatprep.subr.bf16.mxu0 0
  %1003 = vmatpush1.bf16.msra.mxu0 0
  %1004 = vmatprep.subr.bf16.mxu0 0
  %1005 = vmatpush1.bf16.msra.mxu0 0
  %1006 = vmatprep.subr.bf16.mxu0 0
  %1007 = vmatpush1.bf16.msra.mxu0 0
  %1008 = vmatprep.subr.bf16.mxu0 0
  %1009 = vmatpush1.bf16.msra.mxu0 %v990
  %1010 = vmatprep.subr.bf16.mxu0 0
  %1011 = vmatpush1.bf16.msra.mxu0 %v989
  %1012 = vmatprep.subr.bf16.mxu0 0
  %1013 = vmatpush2.bf16.msra.mxu0 0
  %1014 = vmatprep.subr.bf16.mxu0 0
  %1015 = vmatpush2.bf16.msra.mxu0 0
  %1016 = vmatprep.subr.bf16.mxu0 0
  %1017 = vmatpush2.bf16.msra.mxu0 0
  %1018 = vmatprep.subr.bf16.mxu0 0
  %1019 = vmatpush2.bf16.msra.mxu0 0
  %1020 = vmatprep.subr.bf16.mxu0 0
  %1021 = vmatpush2.bf16.msra.mxu0 0
  %1022 = vmatprep.subr.bf16.mxu0 0
  %1023 = vmatpush2.bf16.msra.mxu0 0
  %1024 = vmatprep.subr.bf16.mxu0 0
  %1025 = vmatpush2.bf16.msra.mxu0 0
  %1026 = vmatprep.subr.bf16.mxu0 0
  %1027 = vmatpush2.bf16.msra.mxu0 0
  %1028 = vmatprep.mubr.bf16.mxu0 0
  %1029 = vmatmul.mubr.bf16.gmra.mxu0 %v994
  %v1030 = vpop.f32.mrf.mxu0
  %v1031 = vadd.f32 %v980, %v1030
  %v1032 = vpop.f32.mrf.mxu0
  %v1033 = vpop.f32.mrf.mxu0
  %v1034 = vadd.f32 %v980, %v1033
  %v1035 = vpop.f32.mrf.mxu0
  %1036 = vdwg.mxu0
  %v1037 = vpack.c.bf16 %v1034, %v1031
  %v1039 = vunpack.c.l.b16 %v1037
  %v1040 = vunpack.c.h.b16 %v1037
  %v1041 = vpack.c.b16 %v1039, %v1039
  %v1042 = vpack.c.b16 %v1040, %v1040
  %1045 = vst [vmem:[%s3] sm:$0xf] %v1041
  %1046 = vst [vmem:[%s3 + $0x4] sm:$0xf] %v1042
  // Predicated region
  $region14: #{conv_agent_forward.1} parent=0 // pred_check
    _
  $region15: #{conv_agent_forward.1} parent=0 // pred_check_branch
    %1048 = sbr.rel (0) target = $region17
  $region16: #{conv_agent_forward.1} parent=0 // pred_region
    _
  $region17: #{conv_agent_forward.1} parent=0 // pred_fallthru
    _
  // Predicated region
  $region18: #{conv_agent_forward.1} parent=0 // pred_check
    _
  $region19: #{conv_agent_forward.1} parent=0 // pred_check_branch
    %1050 = sbr.rel (0) target = $region21
  $region20: #{conv_agent_forward.1} parent=0 // pred_region
    _
  $region21: #{conv_agent_forward.1} parent=0 // pred_fallthru
    _

</llo_original>
